<compile_context>
chip_gen: v7x
topology: tpu7x:2x2x1
jax: 0.10.0
libtpu: 0.0.40
codegen_flags: <defaults>
</compile_context>

<pallas_src>
import jax
import jax.numpy as jnp
import numpy as np
from jax.experimental import pallas as pl
from jax.experimental.pallas import tpu as pltpu


def _round_up(x, m):
    return (x + m - 1) // m * m


# ---------------------------------------------------------------------------
# Kernels
# ---------------------------------------------------------------------------

def _span_head_kernel(n_all_ref, span_ref, w_se_n_ref, w_se_span_ref, b_se_ref,
                      start_ref, end_ref):
    """One (B, ts, H) token tile -> (B, ts) start and (B, ts) end logits.

    start/end_linear have been folded through narr_linear in the wrapper, so
    each token only needs an (H, 2) projection (both heads in one MXU push).
    """
    B, ts, H = n_all_ref.shape
    flat = n_all_ref[...].reshape(B * ts, H)

    # Token contribution, both heads at once: (B*ts, 2), f32 accumulation.
    se = jnp.dot(flat, w_se_n_ref[...], preferred_element_type=jnp.float32)
    # Per-batch span contribution + folded biases: (B, 2), f32.
    span_se = jnp.dot(span_ref[...], w_se_span_ref[...],
                      preferred_element_type=jnp.float32) + b_se_ref[...]

    start = se[:, 0:1].reshape(B, ts) + span_se[:, 0:1]
    end = se[:, 1:2].reshape(B, ts) + span_se[:, 1:2]
    start_ref[...] = start      # lane-dense (B, ts) stores
    end_ref[...] = end


def _logits_kernel(cls_n_ref, cls_q_ref, logits_ref):
    # logits = cls_n @ cls_q^T   (torch.matmul(cls_n, cls_q.transpose(0, 1)))
    logits_ref[...] = jax.lax.dot_general(
        cls_n_ref[...], cls_q_ref[...],
        dimension_numbers=(((1,), (1,)), ((), ())),
        preferred_element_type=jnp.float32)


# ---------------------------------------------------------------------------
# Wrappers
# ---------------------------------------------------------------------------

def fold_params(params):
    """Fold start/end_linear through narr_linear.  Params in PyTorch layout:
       narr_w (H, 2H), narr_b (H,), start_w (1, H), start_b (1,), end_w, end_b.
    """
    H = params["narr_w"].shape[0]
    w_se = jnp.stack([params["start_w"][0], params["end_w"][0]], axis=1)   # (H, 2)
    w_fold = params["narr_w"].T @ w_se                                     # (2H, 2)
    b_se = params["narr_b"] @ w_se + jnp.stack(
        [params["start_b"][0], params["end_b"][0]])                        # (2,)
    return {"w_se_span": w_fold[:H],   # multiplies cls_q_span (first half of concat)
            "w_se_n": w_fold[H:],      # multiplies cls_n_all tokens (second half)
            "b_se": b_se}


def joint_head(cls_q_span, cls_n_all, cls_n, cls_q, folded, *,
               seq_tile=256, matmul_dtype=jnp.bfloat16):
    B, S, H = cls_n_all.shape
    Nq = cls_q.shape[0]

    # Token-tile size: either the full (8-padded) sequence, or a multiple of
    # 128 so all blocks satisfy the (8, 128) tiling rule and output stores are
    # lane-dense / unmasked.
    S8 = _round_up(S, 8)
    if S8 <= seq_tile:
        ts = S8
    else:
        ts = max(128, (seq_tile // 128) * 128)
    S_pad = _round_up(S8, ts)
    if S_pad != S:
        cls_n_all = jnp.pad(cls_n_all, ((0, 0), (0, S_pad - S), (0, 0)))

    n_all = cls_n_all.astype(matmul_dtype)
    span = cls_q_span.astype(matmul_dtype)
    w_se_n = folded["w_se_n"].astype(matmul_dtype)
    w_se_span = folded["w_se_span"].astype(matmul_dtype)
    b_se = folded["b_se"].reshape(1, 2).astype(jnp.float32)

    grid = (S_pad // ts,)
    start, end = pl.pallas_call(
        _span_head_kernel,
        out_shape=(jax.ShapeDtypeStruct((B, S_pad), jnp.float32),
                   jax.ShapeDtypeStruct((B, S_pad), jnp.float32)),
        grid_spec=pltpu.PrefetchScalarGridSpec(
            num_scalar_prefetch=0,
            grid=grid,
            in_specs=[
                pl.BlockSpec((B, ts, H), lambda j: (0, j, 0)),   # streamed tile
                pl.BlockSpec((B, H), lambda j: (0, 0)),          # resident
                pl.BlockSpec((H, 2), lambda j: (0, 0)),          # resident
                pl.BlockSpec((H, 2), lambda j: (0, 0)),          # resident
                pl.BlockSpec((1, 2), lambda j: (0, 0)),          # resident (folded biases)
            ],
            out_specs=[
                pl.BlockSpec((B, ts), lambda j: (0, j)),
                pl.BlockSpec((B, ts), lambda j: (0, j)),
            ]),
        compiler_params=pltpu.CompilerParams(
            dimension_semantics=("parallel",)),
    )(n_all, span, w_se_n, w_se_span, b_se)

    if S_pad != S:
        start = start[:, :S]
        end = end[:, :S]

    # Tiny (B,H)x(H,Nq) matmul: separate micro-call so it is not re-stored
    # every grid step of the tiled kernel.
    vmem = pl.BlockSpec(memory_space=pltpu.MemorySpace.VMEM)
    logits = pl.pallas_call(
        _logits_kernel,
        out_shape=jax.ShapeDtypeStruct((B, Nq), jnp.float32),
        in_specs=[vmem, vmem],
        out_specs=vmem,
    )(cls_n.astype(jnp.float32), cls_q.astype(jnp.float32))

    return logits, start, end


# ---------------------------------------------------------------------------
# References (direct translation of the PyTorch forward)
# ---------------------------------------------------------------------------

def reference_jax(cls_q_span, cls_n_all, cls_n, cls_q, params):
    B, S, H = cls_n_all.shape
    span_rep = jnp.broadcast_to(cls_q_span[:, None, :], (B, S, H))
    cat = jnp.concatenate([span_rep, cls_n_all], axis=-1)           # (B, S, 2H)
    compressed = cat @ params["narr_w"].T + params["narr_b"]
    start = (compressed @ params["start_w"].T)[..., 0] + params["start_b"][0]
    end = (compressed @ params["end_w"].T)[..., 0] + params["end_b"][0]
    logits = cls_n @ cls_q.T
    return logits, start, end


def _check_fold_algebra_f64(cls_q_span, cls_n_all, params):
    """Prove in float64 that folding start/end through narr_linear is exact."""
    x_span = np.asarray(cls_q_span, np.float64)
    x_n = np.asarray(cls_n_all, np.float64)
    p = {k: np.asarray(v, np.float64) for k, v in params.items()}
    B, S, H = x_n.shape
    cat = np.concatenate(
        [np.broadcast_to(x_span[:, None, :], (B, S, H)), x_n], axis=-1)
    compressed = cat @ p["narr_w"].T + p["narr_b"]
    start_d = compressed @ p["start_w"][0] + p["start_b"][0]
    end_d = compressed @ p["end_w"][0] + p["end_b"][0]
    w_se = np.stack([p["start_w"][0], p["end_w"][0]], axis=1)        # (H, 2)
    w_fold = p["narr_w"].T @ w_se                                    # (2H, 2)
    b_se = p["narr_b"] @ w_se + np.stack([p["start_b"][0], p["end_b"][0]])
    se = (x_n.reshape(B * S, H) @ w_fold[H:]
          + np.repeat(x_span @ w_fold[:H], S, axis=0) + b_se)
    np.testing.assert_allclose(se[:, 0].reshape(B, S), start_d, rtol=1e-9, atol=1e-9)
    np.testing.assert_allclose(se[:, 1].reshape(B, S), end_d, rtol=1e-9, atol=1e-9)


if __name__ == "__main__":
    B, S, H, Nq = 2, 256, 128, 8   # small stand-in for BERT (real: S=512, H=768)
    key = jax.random.PRNGKey(0)
    ks = jax.random.split(key, 8)
    init_std = 0.02  # config.initializer_range

    # TODO(synk): the BERT/RoBERTa encoder backbone (LLM_model) is not
    # translated; its pooled / last_hidden_state outputs are simulated here.
    cls_q_span = jax.random.normal(ks[0], (B, H), jnp.float32)   # span pooled/CLS
    cls_n_all = jax.random.normal(ks[1], (B, S, H), jnp.float32) # narrative hidden states
    cls_n = jax.random.normal(ks[2], (B, H), jnp.float32)        # narrative pooled/CLS
    cls_q = jax.random.normal(ks[3], (Nq, H), jnp.float32)       # quote pooled/CLS

    # Head parameters in PyTorch layout, mirroring the module's __init__
    # (normal(0, initializer_range) weights, zero biases).
    params = {
        "narr_w": init_std * jax.random.normal(ks[4], (H, 2 * H), jnp.float32),
        "narr_b": jnp.zeros((H,), jnp.float32),
        "start_w": init_std * jax.random.normal(ks[5], (1, H), jnp.float32),
        "start_b": jnp.zeros((1,), jnp.float32),
        "end_w": init_std * jax.random.normal(ks[6], (1, H), jnp.float32),
        "end_b": jnp.zeros((1,), jnp.float32),
    }

    # 1) float64 proof that the folding transformation is algebraically exact.
    _check_fold_algebra_f64(cls_q_span, cls_n_all, params)

    folded = fold_params(params)
    ref_logits, ref_start, ref_end = reference_jax(
        cls_q_span, cls_n_all, cls_n, cls_q, params)

    # 2) f32-input kernel run (grid of 2 seq tiles).
    logits, start, end = jax.block_until_ready(
        joint_head(cls_q_span, cls_n_all, cls_n, cls_q, folded,
                   seq_tile=128, matmul_dtype=jnp.float32))
    assert logits.shape == (B, Nq)
    assert start.shape == (B, S) and end.shape == (B, S)
    np.testing.assert_allclose(np.asarray(logits), np.asarray(ref_logits),
                               rtol=1e-5, atol=1e-5)
    np.testing.assert_allclose(np.asarray(start), np.asarray(ref_start),
                               rtol=2e-2, atol=2e-3)
    np.testing.assert_allclose(np.asarray(end), np.asarray(ref_end),
                               rtol=2e-2, atol=2e-3)

    # 3) bf16 MXU-input kernel run (recommended production path).
    logits_bf, start_bf, end_bf = jax.block_until_ready(
        joint_head(cls_q_span, cls_n_all, cls_n, cls_q, folded,
                   seq_tile=128, matmul_dtype=jnp.bfloat16))
    np.testing.assert_allclose(np.asarray(logits_bf), np.asarray(ref_logits),
                               rtol=1e-5, atol=1e-5)
    np.testing.assert_allclose(np.asarray(start_bf), np.asarray(ref_start),
                               rtol=5e-2, atol=5e-3)
    np.testing.assert_allclose(np.asarray(end_bf), np.asarray(ref_end),
                               rtol=5e-2, atol=5e-3)

    print("KERNEL_OK")
</pallas_src>

<mosaic_0001>
module attributes {stable_mosaic.version = 11 : i64} {
  func.func @_span_head_kernel(%arg0: i32, %arg1: memref<2x128x128xf32, #tpu.memory_space<vmem>>, %arg2: memref<2x128xf32, #tpu.memory_space<vmem>>, %arg3: memref<128x2xf32, #tpu.memory_space<vmem>>, %arg4: memref<128x2xf32, #tpu.memory_space<vmem>>, %arg5: memref<1x2xf32, #tpu.memory_space<vmem>>, %arg6: memref<2x128xf32, #tpu.memory_space<vmem>>, %arg7: memref<2x128xf32, #tpu.memory_space<vmem>>) attributes {dimension_semantics = [#tpu.dimension_semantics<parallel>], iteration_bounds = array<i64: 2>, scalar_prefetch = 0 : i64, scratch_operands = 0 : i64, tpu.core_type = #tpu.core_type<tc>, window_params = [{transform_indices = @transform_0, window_bounds = array<i64: 2, 128, 128>}, {pipeline_mode = #tpu.pipeline_mode<synchronous>, transform_indices = @transform_1, window_bounds = array<i64: 2, 128>}, {pipeline_mode = #tpu.pipeline_mode<synchronous>, transform_indices = @transform_2, window_bounds = array<i64: 128, 2>}, {pipeline_mode = #tpu.pipeline_mode<synchronous>, transform_indices = @transform_3, window_bounds = array<i64: 128, 2>}, {pipeline_mode = #tpu.pipeline_mode<synchronous>, transform_indices = @transform_4, window_bounds = array<i64: 1, 2>}, {transform_indices = @transform_5, window_bounds = array<i64: 2, 128>}, {transform_indices = @transform_6, window_bounds = array<i64: 2, 128>}]} {
    %c0 = arith.constant 0 : index
    %c0_0 = arith.constant 0 : index
    %c0_1 = arith.constant 0 : index
    %0 = vector.load %arg1[%c0, %c0_0, %c0_1] : memref<2x128x128xf32, #tpu.memory_space<vmem>>, vector<2x128x128xf32>
    %1 = vector.shape_cast %0 : vector<2x128x128xf32> to vector<256x128xf32>
    %c0_2 = arith.constant 0 : index
    %c0_3 = arith.constant 0 : index
    %2 = vector.load %arg3[%c0_2, %c0_3] : memref<128x2xf32, #tpu.memory_space<vmem>>, vector<128x2xf32>
    %cst = arith.constant dense<0.000000e+00> : vector<256x2xf32>
    %3 = tpu.matmul %1, %2, %cst {dimension_numbers = #tpu.dot_dimension_numbers<[1], [0], [0], [1], [0, 0, 1, 1], [], []>} : vector<256x128xf32>, vector<128x2xf32>, vector<256x2xf32> -> vector<256x2xf32>
    %c0_4 = arith.constant 0 : index
    %c0_5 = arith.constant 0 : index
    %4 = vector.load %arg2[%c0_4, %c0_5] : memref<2x128xf32, #tpu.memory_space<vmem>>, vector<2x128xf32>
    %c0_6 = arith.constant 0 : index
    %c0_7 = arith.constant 0 : index
    %5 = vector.load %arg4[%c0_6, %c0_7] : memref<128x2xf32, #tpu.memory_space<vmem>>, vector<128x2xf32>
    %cst_8 = arith.constant dense<0.000000e+00> : vector<2x2xf32>
    %6 = tpu.matmul %4, %5, %cst_8 {dimension_numbers = #tpu.dot_dimension_numbers<[1], [0], [0], [1], [0, 0, 1, 1], [], []>} : vector<2x128xf32>, vector<128x2xf32>, vector<2x2xf32> -> vector<2x2xf32>
    %c0_9 = arith.constant 0 : index
    %c0_10 = arith.constant 0 : index
    %7 = vector.load %arg5[%c0_9, %c0_10] : memref<1x2xf32, #tpu.memory_space<vmem>>, vector<1x2xf32>
    %8 = vector.broadcast %7 : vector<1x2xf32> to vector<2x2xf32>
    %9 = arith.addf %6, %8 : vector<2x2xf32>
    %10 = vector.extract_strided_slice %3 {offsets = [0, 0], sizes = [256, 1], strides = [1, 1]} : vector<256x2xf32> to vector<256x1xf32>
    %11 = vector.shape_cast %10 : vector<256x1xf32> to vector<2x128xf32>
    %12 = vector.extract_strided_slice %9 {offsets = [0, 0], sizes = [2, 1], strides = [1, 1]} : vector<2x2xf32> to vector<2x1xf32>
    %13 = vector.broadcast %12 : vector<2x1xf32> to vector<2x128xf32>
    %14 = arith.addf %11, %13 : vector<2x128xf32>
    %15 = vector.extract_strided_slice %3 {offsets = [0, 1], sizes = [256, 1], strides = [1, 1]} : vector<256x2xf32> to vector<256x1xf32>
    %16 = vector.shape_cast %15 : vector<256x1xf32> to vector<2x128xf32>
    %17 = vector.extract_strided_slice %9 {offsets = [0, 1], sizes = [2, 1], strides = [1, 1]} : vector<2x2xf32> to vector<2x1xf32>
    %18 = vector.broadcast %17 : vector<2x1xf32> to vector<2x128xf32>
    %19 = arith.addf %16, %18 : vector<2x128xf32>
    %c0_11 = arith.constant 0 : index
    %c0_12 = arith.constant 0 : index
    %20 = vector.load %arg6[%c0_11, %c0_12] : memref<2x128xf32, #tpu.memory_space<vmem>>, vector<2x128xf32>
    tpu.vector_store %arg6[%c0_11, %c0_12], %14 {strides = array<i32>} : memref<2x128xf32, #tpu.memory_space<vmem>>, vector<2x128xf32>,
    %c0_13 = arith.constant 0 : index
    %c0_14 = arith.constant 0 : index
    %21 = vector.load %arg7[%c0_13, %c0_14] : memref<2x128xf32, #tpu.memory_space<vmem>>, vector<2x128xf32>
    tpu.vector_store %arg7[%c0_13, %c0_14], %19 {strides = array<i32>} : memref<2x128xf32, #tpu.memory_space<vmem>>, vector<2x128xf32>,
    return
  }
  func.func @transform_0(%arg0: i32) -> (i32, i32, i32) {
    %c0_i32 = arith.constant 0 : i32
    %c0_i32_0 = arith.constant 0 : i32
    %c0_i32_1 = arith.constant 0 : i32
    return %c0_i32, %arg0, %c0_i32_0 : i32, i32, i32
  }
  func.func @transform_1(%arg0: i32) -> (i32, i32) {
    %c0_i32 = arith.constant 0 : i32
    %c0_i32_0 = arith.constant 0 : i32
    %c0_i32_1 = arith.constant 0 : i32
    return %c0_i32, %c0_i32_0 : i32, i32
  }
  func.func @transform_2(%arg0: i32) -> (i32, i32) {
    %c0_i32 = arith.constant 0 : i32
    %c0_i32_0 = arith.constant 0 : i32
    %c0_i32_1 = arith.constant 0 : i32
    return %c0_i32, %c0_i32_0 : i32, i32
  }
  func.func @transform_3(%arg0: i32) -> (i32, i32) {
    %c0_i32 = arith.constant 0 : i32
    %c0_i32_0 = arith.constant 0 : i32
    %c0_i32_1 = arith.constant 0 : i32
    return %c0_i32, %c0_i32_0 : i32, i32
  }
  func.func @transform_4(%arg0: i32) -> (i32, i32) {
    %c0_i32 = arith.constant 0 : i32
    %c0_i32_0 = arith.constant 0 : i32
    %c0_i32_1 = arith.constant 0 : i32
    return %c0_i32, %c0_i32_0 : i32, i32
  }
  func.func @transform_5(%arg0: i32) -> (i32, i32) {
    %c0_i32 = arith.constant 0 : i32
    %c0_i32_0 = arith.constant 0 : i32
    return %c0_i32, %arg0 : i32, i32
  }
  func.func @transform_6(%arg0: i32) -> (i32, i32) {
    %c0_i32 = arith.constant 0 : i32
    %c0_i32_0 = arith.constant 0 : i32
    return %c0_i32, %arg0 : i32, i32
  }
}

</mosaic_0001>

<llo_original>
// kernel: tpu_custom_call.1
$region0: #{tpu_custom_call.1}
  #allocation0 [shape = 'u32[]', space=smem, size = 0x4, offset = 0x4, fixed_abs, tag = 'smem constant byte address 0x4 - core index']
  #allocation1 [shape = 'u32[144,128]{1,0:T(1,128)}', space=vmem, size = 0x12000, scoped, tag = 'internal scratch']
  #allocation8 [shape = 's32[]', space=sflag, size = 0x4, offset = 0, fixed_abs, tag = 'sflag constant byte address 0x0 - dummy sync flag']
  %s0 = inlined_call_operand.hbm [shape: f32[2,256,128], index: 0, kind: input, shape index: {}]
  %s1 = inlined_call_operand.vmem [shape: f32[2,128], index: 1, kind: input, shape index: {}]
  %s2 = inlined_call_operand.vmem [shape: f32[128,2], index: 2, kind: input, shape index: {}]
  %s3 = inlined_call_operand.vmem [shape: f32[128,2], index: 3, kind: input, shape index: {}]
  %s4 = inlined_call_operand.vmem [shape: f32[1,2], index: 4, kind: input, shape index: {}]
  %s5 = inlined_call_operand.hbm [shape: f32[2,256], index: 5, kind: output, shape index: {0}]
  %s6 = inlined_call_operand.hbm [shape: f32[2,256], index: 6, kind: output, shape index: {1}]
  %7 = xla_tuple %s5, %s6
  %s8 = sld [smem:[#allocation0]]
  $region65: #{tpu_custom_call.1} parent=0
    _
  %s10 = ssub.s32 1, %s8
  %s11 = scalar_select 0, %s10, %s8
  $region1: #{tpu_custom_call.1} parent=0
    #allocation2 [shape = 'u8[262144]{0}', space=vmem, size = 0x40000, scoped, tag = 'input window, operand 0']
    #allocation3 [shape = 's32[2]{0}', space=sflag, size = 0x8, scoped, tag = 'scoped memory for tpu_custom_call.1']
    #allocation4 [shape = 's32[2]{0}', space=sflag, size = 0x8, scoped, tag = 'scoped memory for tpu_custom_call.1']
    #allocation5 [shape = 'u8[2048]{0}', space=vmem, size = 0x800, scoped, tag = 'output window, operand 0']
    #allocation6 [shape = 'u8[2048]{0}', space=vmem, size = 0x800, scoped, tag = 'output window, operand 1']
    #allocation7 [shape = 's32[2]{0}', space=sflag, size = 0x8, scoped, tag = 'scoped memory for tpu_custom_call.1']
    %12 = vsyncpa [#allocation3], 0
    %s13 = scalar_lea.sflag [#allocation3], 1
    %14 = vsyncpa %s13, 0
    %15 = vsyncpa [#allocation4], 0
    %s16 = scalar_lea.sflag [#allocation4], 1
    %17 = vsyncpa %s16, 0
    %18 = vsyncpa [#allocation7], 0
    %s19 = scalar_lea.sflag [#allocation7], 1
    %20 = vsyncpa %s19, 0
    loop: start=0, step=1, limit=4
    $region2: #{tpu_custom_call.1} parent=1 // loop_pre_header
      _
    $region3: #{tpu_custom_call.1} parent=1 // loop_header
      %s22 = sphi 0, %s26
      %p23 = scmp.ge.s32.totalorder %s22, 4
      %s32 = sphi 0, %s34
      %s35 = sphi 0, %s32
      %s36 = sphi 0, %s35
      %s52 = sphi 0, %s36
      %s56 = sphi 0, %s56
      %s58 = sphi 0, %s56
      %s59 = sphi 0, %s58
      %s73 = sphi 0, %s59
      %s77 = sphi 0, %s77
      %s79 = sphi 0, %s77
      %s80 = sphi 0, %s79
      %s94 = sphi 0, %s80
      %s98 = sphi 0, %s98
      %s100 = sphi 0, %s98
      %s101 = sphi 0, %s100
      %s115 = sphi 0, %s101
      %s119 = sphi 0, %s119
      %s121 = sphi 0, %s119
      %s122 = sphi 0, %s121
      %s136 = sphi 0, %s122
      %s142 = sphi 0, %s144
      %s145 = sphi 0, %s142
      %s146 = sphi 0, %s145
      %s162 = sphi 0, %s146
      %s168 = sphi 0, %s170
      %s171 = sphi 0, %s168
      %s172 = sphi 0, %s171
      %s188 = sphi 0, %s172
    $region4: #{tpu_custom_call.1} parent=1 // loop_header_branch
      %25 = sbr.rel (%p23) target = $region8
    $region5: #{tpu_custom_call.1} parent=1 // loop_body
      %s27 = ssub.s32 %s22, 1
      %s28 = ssub.s32 %s22, 2
      %s29 = sadd.s32 %s22, 1
      %s30 = ssub.s32 %s22, %s29
      %p31 = scmp.eq.s32.totalorder %s30, 0
      %s33 = sadd.s32 %s32, 1
      %s34 = scalar_select %p31, %s32, %s33
      %p37 = pneg %p31
      %p38 = scmp.eq.s32.totalorder %s22, 1
      %p39 = por %p37, %p38
      %p40 = scmp.ne.s32.totalorder %s32, %s35
      %p41 = scmp.eq.s32.totalorder %s22, 0
      %p42 = por %p40, %p41
      %p43 = scmp.ne.s32.totalorder %s32, %s35
      %p44 = scmp.eq.s32.totalorder %s27, 1
      %p45 = por %p43, %p44
      %p46 = scmp.ne.s32.totalorder %s35, %s36
      %p47 = scmp.eq.s32.totalorder %s27, 0
      %p48 = por %p46, %p47
      %p49 = scmp.ne.s32.totalorder %s35, %s36
      %p50 = scmp.eq.s32.totalorder %s28, 1
      %p51 = por %p49, %p50
      %p53 = scmp.ne.s32.totalorder %s36, %s52
      %p54 = scmp.eq.s32.totalorder %s28, 0
      %p55 = por %p53, %p54
      %s57 = sadd.s32 %s56, 1
      %p60 = scmp.eq.s32.totalorder %s22, 1
      %p61 = scmp.ne.s32.totalorder %s56, %s58
      %p62 = scmp.eq.s32.totalorder %s22, 0
      %p63 = por %p61, %p62
      %p64 = scmp.ne.s32.totalorder %s56, %s58
      %p65 = scmp.eq.s32.totalorder %s27, 1
      %p66 = por %p64, %p65
      %p67 = scmp.ne.s32.totalorder %s58, %s59
      %p68 = scmp.eq.s32.totalorder %s27, 0
      %p69 = por %p67, %p68
      %p70 = scmp.ne.s32.totalorder %s58, %s59
      %p71 = scmp.eq.s32.totalorder %s28, 1
      %p72 = por %p70, %p71
      %p74 = scmp.ne.s32.totalorder %s59, %s73
      %p75 = scmp.eq.s32.totalorder %s28, 0
      %p76 = por %p74, %p75
      %s78 = sadd.s32 %s77, 1
      %p81 = scmp.eq.s32.totalorder %s22, 1
      %p82 = scmp.ne.s32.totalorder %s77, %s79
      %p83 = scmp.eq.s32.totalorder %s22, 0
      %p84 = por %p82, %p83
      %p85 = scmp.ne.s32.totalorder %s77, %s79
      %p86 = scmp.eq.s32.totalorder %s27, 1
      %p87 = por %p85, %p86
      %p88 = scmp.ne.s32.totalorder %s79, %s80
      %p89 = scmp.eq.s32.totalorder %s27, 0
      %p90 = por %p88, %p89
      %p91 = scmp.ne.s32.totalorder %s79, %s80
      %p92 = scmp.eq.s32.totalorder %s28, 1
      %p93 = por %p91, %p92
      %p95 = scmp.ne.s32.totalorder %s80, %s94
      %p96 = scmp.eq.s32.totalorder %s28, 0
      %p97 = por %p95, %p96
      %s99 = sadd.s32 %s98, 1
      %p102 = scmp.eq.s32.totalorder %s22, 1
      %p103 = scmp.ne.s32.totalorder %s98, %s100
      %p104 = scmp.eq.s32.totalorder %s22, 0
      %p105 = por %p103, %p104
      %p106 = scmp.ne.s32.totalorder %s98, %s100
      %p107 = scmp.eq.s32.totalorder %s27, 1
      %p108 = por %p106, %p107
      %p109 = scmp.ne.s32.totalorder %s100, %s101
      %p110 = scmp.eq.s32.totalorder %s27, 0
      %p111 = por %p109, %p110
      %p112 = scmp.ne.s32.totalorder %s100, %s101
      %p113 = scmp.eq.s32.totalorder %s28, 1
      %p114 = por %p112, %p113
      %p116 = scmp.ne.s32.totalorder %s101, %s115
      %p117 = scmp.eq.s32.totalorder %s28, 0
      %p118 = por %p116, %p117
      %s120 = sadd.s32 %s119, 1
      %p123 = scmp.eq.s32.totalorder %s22, 1
      %p124 = scmp.ne.s32.totalorder %s119, %s121
      %p125 = scmp.eq.s32.totalorder %s22, 0
      %p126 = por %p124, %p125
      %p127 = scmp.ne.s32.totalorder %s119, %s121
      %p128 = scmp.eq.s32.totalorder %s27, 1
      %p129 = por %p127, %p128
      %p130 = scmp.ne.s32.totalorder %s121, %s122
      %p131 = scmp.eq.s32.totalorder %s27, 0
      %p132 = por %p130, %p131
      %p133 = scmp.ne.s32.totalorder %s121, %s122
      %p134 = scmp.eq.s32.totalorder %s28, 1
      %p135 = por %p133, %p134
      %p137 = scmp.ne.s32.totalorder %s122, %s136
      %p138 = scmp.eq.s32.totalorder %s28, 0
      %p139 = por %p137, %p138
      %s140 = ssub.s32 %s22, %s29
      %p141 = scmp.eq.s32.totalorder %s140, 0
      %s143 = sadd.s32 %s142, 1
      %s144 = scalar_select %p141, %s142, %s143
      %p147 = pneg %p141
      %p148 = scmp.eq.s32.totalorder %s22, 1
      %p149 = por %p147, %p148
      %p150 = scmp.ne.s32.totalorder %s142, %s145
      %p151 = scmp.eq.s32.totalorder %s22, 0
      %p152 = por %p150, %p151
      %p153 = scmp.ne.s32.totalorder %s142, %s145
      %p154 = scmp.eq.s32.totalorder %s27, 1
      %p155 = por %p153, %p154
      %p156 = scmp.ne.s32.totalorder %s145, %s146
      %p157 = scmp.eq.s32.totalorder %s27, 0
      %p158 = por %p156, %p157
      %p159 = scmp.ne.s32.totalorder %s145, %s146
      %p160 = scmp.eq.s32.totalorder %s28, 1
      %p161 = por %p159, %p160
      %p163 = scmp.ne.s32.totalorder %s146, %s162
      %p164 = scmp.eq.s32.totalorder %s28, 0
      %p165 = por %p163, %p164
      %s166 = ssub.s32 %s22, %s29
      %p167 = scmp.eq.s32.totalorder %s166, 0
      %s169 = sadd.s32 %s168, 1
      %s170 = scalar_select %p167, %s168, %s169
      %p173 = pneg %p167
      %p174 = scmp.eq.s32.totalorder %s22, 1
      %p175 = por %p173, %p174
      %p176 = scmp.ne.s32.totalorder %s168, %s171
      %p177 = scmp.eq.s32.totalorder %s22, 0
      %p178 = por %p176, %p177
      %p179 = scmp.ne.s32.totalorder %s168, %s171
      %p180 = scmp.eq.s32.totalorder %s27, 1
      %p181 = por %p179, %p180
      %p182 = scmp.ne.s32.totalorder %s171, %s172
      %p183 = scmp.eq.s32.totalorder %s27, 0
      %p184 = por %p182, %p183
      %p185 = scmp.ne.s32.totalorder %s171, %s172
      %p186 = scmp.eq.s32.totalorder %s28, 1
      %p187 = por %p185, %p186
      %p189 = scmp.ne.s32.totalorder %s172, %s188
      %p190 = scmp.eq.s32.totalorder %s28, 0
      %p191 = por %p189, %p190
      %p192 = scmp.le.s32.totalorder 1, %s22
      %p193 = scmp.lt.s32.totalorder %s22, 3
      %p194 = pnand %p192, %p193
      %p195 = pneg %p194
      // Predicated region
      $region9: #{tpu_custom_call.1} parent=5 // pred_check
        _
      $region10: #{tpu_custom_call.1} parent=5 // pred_check_branch
        %197 = sbr.rel (%p194) target = $region12
      $region11: #{tpu_custom_call.1} parent=5 // pred_region
        %s198 = ssub.s32 %s22, 1
        // Predicated region
        $region13: #{tpu_custom_call.1} parent=11 // pred_check
          %p199 = pneg %p69
        $region14: #{tpu_custom_call.1} parent=11 // pred_check_branch
          %201 = sbr.rel (%p199) target = $region16
        $region15: #{tpu_custom_call.1} parent=11 // pred_region
          _
        $region16: #{tpu_custom_call.1} parent=11 // pred_fallthru
          _
        // Predicated region
        $region17: #{tpu_custom_call.1} parent=11 // pred_check
          %p202 = pneg %p90
        $region18: #{tpu_custom_call.1} parent=11 // pred_check_branch
          %204 = sbr.rel (%p202) target = $region20
        $region19: #{tpu_custom_call.1} parent=11 // pred_region
          _
        $region20: #{tpu_custom_call.1} parent=11 // pred_fallthru
          _
        // Predicated region
        $region21: #{tpu_custom_call.1} parent=11 // pred_check
          %p205 = pneg %p111
        $region22: #{tpu_custom_call.1} parent=11 // pred_check_branch
          %207 = sbr.rel (%p205) target = $region24
        $region23: #{tpu_custom_call.1} parent=11 // pred_region
          _
        $region24: #{tpu_custom_call.1} parent=11 // pred_fallthru
          _
        // Predicated region
        $region25: #{tpu_custom_call.1} parent=11 // pred_check
          %p208 = pneg %p132
        $region26: #{tpu_custom_call.1} parent=11 // pred_check_branch
          %210 = sbr.rel (%p208) target = $region28
        $region27: #{tpu_custom_call.1} parent=11 // pred_region
          _
        $region28: #{tpu_custom_call.1} parent=11 // pred_fallthru
          _
      $region12: #{tpu_custom_call.1} parent=5 // pred_fallthru
        _
      %p211 = scmp.lt.s32.totalorder %s22, 2
      // Predicated region
      $region29: #{tpu_custom_call.1} parent=5 // pred_check
        %p212 = pneg %p211
      $region30: #{tpu_custom_call.1} parent=5 // pred_check_branch
        %214 = sbr.rel (%p212) target = $region32
      $region31: #{tpu_custom_call.1} parent=5 // pred_region
        // Predicated region
        $region33: #{tpu_custom_call.1} parent=31 // pred_check
          %p215 = pneg %p42
        $region34: #{tpu_custom_call.1} parent=31 // pred_check_branch
          %217 = sbr.rel (%p215) target = $region36
        $region35: #{tpu_custom_call.1} parent=31 // pred_region
          #allocation9 [shape = 'u32[6]{0}', space=smem, size = 0x18, scoped, tag = 'DMA stride descriptor']
          %s218 = sand.u32 %s32, 1
          %s219 = scalar_lea.sflag [#allocation3], %s218
          %s220 = sand.u32 %s32, 1
          %s221 = smul.addr %s220, 256
          %s222 = scalar_lea.vmem [#allocation2], %s221
          %s223 = smul.u32 16, %s22
          %s225 = ssub.s32 4096, 4096
          %226 = vsyncadd %s219, %s225
          %s227 = smul.addr %s223, 128
          %s228 = scalar_lea.hbm %s0, %s227
          %s230 = sshll.u32 1, 14
          %s231 = sxor.u32 4294967295, %s230
          %s233 = sld [smem:[#allocation0]]
          %s234 = sadd.s32 2, %s233
          %s236 = sshll.u32 7, 26
          %s237 = sxor.u32 4294967295, %s236
          %s238 = sand.u32 0, %s237
          %s239 = sshll.u32 %s234, 26
          %s240 = sor.u32 %s238, %s239
          %s241 = sshll.u32 %s222, 4
          %s242 = int_to_ptr.vmem [resolvable:$true] %s241
          %248 = sst [smem:[#allocation9]] 4096
          %s249 = scalar_lea.smem [#allocation9], 1
          %250 = sst [smem:[%s249]] 2048
          %s251 = scalar_lea.smem [#allocation9], 2
          %252 = sst [smem:[%s251]] 16
          %s253 = scalar_lea.smem [#allocation9], 3
          %254 = sst [smem:[%s253]] 128
          %s255 = scalar_lea.smem [#allocation9], 4
          %256 = sst [smem:[%s255]] 128
          %s257 = scalar_lea.smem [#allocation9], 5
          %258 = sst [smem:[%s257]] 8
          %260 = dma.general %s228, 4096, %s242, %s219, [#allocation8], [#allocation9], %s240, 0
        $region36: #{tpu_custom_call.1} parent=31 // pred_fallthru
          _
      $region32: #{tpu_custom_call.1} parent=5 // pred_fallthru
        _
      %p261 = scmp.le.s32.totalorder 1, %s22
      %p262 = scmp.lt.s32.totalorder %s22, 3
      %p263 = pnand %p261, %p262
      %p264 = pneg %p263
      // Predicated region
      $region37: #{tpu_custom_call.1} parent=5 // pred_check
        _
      $region38: #{tpu_custom_call.1} parent=5 // pred_check_branch
        %266 = sbr.rel (%p263) target = $region40
      $region39: #{tpu_custom_call.1} parent=5 // pred_region
        %s267 = ssub.s32 %s22, 1
        %s268 = sand.u32 %s35, 1
        %s269 = scalar_lea.sflag [#allocation3], %s268
        %s270 = sand.u32 %s35, 1
        %s271 = smul.addr %s270, 256
        %s272 = scalar_lea.vmem [#allocation2], %s271
        // Predicated region
        $region41: #{tpu_custom_call.1} parent=39 // pred_check
          %p273 = pneg %p48
        $region42: #{tpu_custom_call.1} parent=39 // pred_check_branch
          %275 = sbr.rel (%p273) target = $region44
        $region43: #{tpu_custom_call.1} parent=39 // pred_region
          %276 = dma.done %s269, 4096
        $region44: #{tpu_custom_call.1} parent=39 // pred_fallthru
          _
        %s277 = sand.u32 %s35, 1
        %s278 = scalar_lea.sflag [#allocation3], %s277
        %s279 = sand.u32 %s35, 1
        %s280 = smul.addr %s279, 256
        %s281 = scalar_lea.vmem [#allocation2], %s280
        %p282 = pneg %p48
        %p283 = pneg %p45
        %p284 = pneg %p69
        %p285 = pneg %p66
        %p286 = pneg %p90
        %p287 = pneg %p87
        %p288 = pneg %p111
        %p289 = pneg %p108
        %p290 = pneg %p132
        %p291 = pneg %p129
        %p292 = pneg %p158
        %p293 = pneg %p155
        %s294 = sand.u32 %s145, 1
        %s295 = scalar_lea.sflag [#allocation4], %s294
        %s296 = sand.u32 %s145, 1
        %s297 = smul.addr %s296, 2
        %s298 = scalar_lea.vmem [#allocation5], %s297
        %p299 = pneg %p184
        %p300 = pneg %p181
        %s301 = sand.u32 %s171, 1
        %s302 = scalar_lea.sflag [#allocation7], %s301
        %s303 = sand.u32 %s171, 1
        %s304 = smul.addr %s303, 2
        %s305 = scalar_lea.vmem [#allocation6], %s304
        %s306 = smul.u32 16, %s27
        %v307 = vld [vmem:[%s272] sm:$0xff]
        %v308 = vld [vmem:[%s272 + $0x8] sm:$0xff]
        %v309 = vld [vmem:[%s272 + $0x10] sm:$0xff]
        %v310 = vld [vmem:[%s272 + $0x18] sm:$0xff]
        %v311 = vld [vmem:[%s272 + $0x20] sm:$0xff]
        %v312 = vld [vmem:[%s272 + $0x28] sm:$0xff]
        %v313 = vld [vmem:[%s272 + $0x30] sm:$0xff]
        %v314 = vld [vmem:[%s272 + $0x38] sm:$0xff]
        %v315 = vld [vmem:[%s272 + $0x40] sm:$0xff]
        %v316 = vld [vmem:[%s272 + $0x48] sm:$0xff]
        %v317 = vld [vmem:[%s272 + $0x50] sm:$0xff]
        %v318 = vld [vmem:[%s272 + $0x58] sm:$0xff]
        %v319 = vld [vmem:[%s272 + $0x60] sm:$0xff]
        %v320 = vld [vmem:[%s272 + $0x68] sm:$0xff]
        %v321 = vld [vmem:[%s272 + $0x70] sm:$0xff]
        %v322 = vld [vmem:[%s272 + $0x78] sm:$0xff]
        %v323 = vld [vmem:[%s272 + $0x80] sm:$0xff]
        %v324 = vld [vmem:[%s272 + $0x88] sm:$0xff]
        %v325 = vld [vmem:[%s272 + $0x90] sm:$0xff]
        %v326 = vld [vmem:[%s272 + $0x98] sm:$0xff]
        %v327 = vld [vmem:[%s272 + $0xa0] sm:$0xff]
        %v328 = vld [vmem:[%s272 + $0xa8] sm:$0xff]
        %v329 = vld [vmem:[%s272 + $0xb0] sm:$0xff]
        %v330 = vld [vmem:[%s272 + $0xb8] sm:$0xff]
        %v331 = vld [vmem:[%s272 + $0xc0] sm:$0xff]
        %v332 = vld [vmem:[%s272 + $0xc8] sm:$0xff]
        %v333 = vld [vmem:[%s272 + $0xd0] sm:$0xff]
        %v334 = vld [vmem:[%s272 + $0xd8] sm:$0xff]
        %v335 = vld [vmem:[%s272 + $0xe0] sm:$0xff]
        %v336 = vld [vmem:[%s272 + $0xe8] sm:$0xff]
        %v337 = vld [vmem:[%s272 + $0xf0] sm:$0xff]
        %v338 = vld [vmem:[%s272 + $0xf8] sm:$0xff]
        %v339 = vld [vmem:[%s2] sm:$0xff]
        %v340 = vld [vmem:[%s2 + $0x8] sm:$0xff]
        %v341 = vld [vmem:[%s2 + $0x10] sm:$0xff]
        %v342 = vld [vmem:[%s2 + $0x18] sm:$0xff]
        %v343 = vld [vmem:[%s2 + $0x20] sm:$0xff]
        %v344 = vld [vmem:[%s2 + $0x28] sm:$0xff]
        %v345 = vld [vmem:[%s2 + $0x30] sm:$0xff]
        %v346 = vld [vmem:[%s2 + $0x38] sm:$0xff]
        %v347 = vld [vmem:[%s2 + $0x40] sm:$0xff]
        %v348 = vld [vmem:[%s2 + $0x48] sm:$0xff]
        %v349 = vld [vmem:[%s2 + $0x50] sm:$0xff]
        %v350 = vld [vmem:[%s2 + $0x58] sm:$0xff]
        %v351 = vld [vmem:[%s2 + $0x60] sm:$0xff]
        %v352 = vld [vmem:[%s2 + $0x68] sm:$0xff]
        %v353 = vld [vmem:[%s2 + $0x70] sm:$0xff]
        %v354 = vld [vmem:[%s2 + $0x78] sm:$0xff]
        %355 = vmatprep.subr.mxu0 0.0
        %356 = vmatpush1.msra.mxu0 %v339
        %357 = vmatprep.subr.mxu0 0.0
        %358 = vmatpush1.msra.mxu0 %v340
        %359 = vmatprep.subr.mxu0 0.0
        %360 = vmatpush1.msra.mxu0 %v341
        %361 = vmatprep.subr.mxu0 0.0
        %362 = vmatpush1.msra.mxu0 %v342
        %363 = vmatprep.subr.mxu0 0.0
        %364 = vmatpush1.msra.mxu0 %v343
        %365 = vmatprep.subr.mxu0 0.0
        %366 = vmatpush1.msra.mxu0 %v344
        %367 = vmatprep.subr.mxu0 0.0
        %368 = vmatpush1.msra.mxu0 %v345
        %369 = vmatprep.subr.mxu0 0.0
        %370 = vmatpush1.msra.mxu0 %v346
        %371 = vmatprep.subr.mxu0 0.0
        %372 = vmatpush1.msra.mxu0 %v347
        %373 = vmatprep.subr.mxu0 0.0
        %374 = vmatpush1.msra.mxu0 %v348
        %375 = vmatprep.subr.mxu0 0.0
        %376 = vmatpush1.msra.mxu0 %v349
        %377 = vmatprep.subr.mxu0 0.0
        %378 = vmatpush1.msra.mxu0 %v350
        %379 = vmatprep.subr.mxu0 0.0
        %380 = vmatpush1.msra.mxu0 %v351
        %381 = vmatprep.subr.mxu0 0.0
        %382 = vmatpush1.msra.mxu0 %v352
        %383 = vmatprep.subr.mxu0 0.0
        %384 = vmatpush1.msra.mxu0 %v353
        %385 = vmatprep.subr.mxu0 0.0
        %386 = vmatpush1.msra.mxu0 %v354
        %387 = vmatprep.subr.mxu0 0.0
        %388 = vmatpush1.msra.mxu0 0.0
        %389 = vmatprep.subr.mxu0 0.0
        %390 = vmatpush1.msra.mxu0 0.0
        %391 = vmatprep.subr.mxu0 0.0
        %392 = vmatpush1.msra.mxu0 0.0
        %393 = vmatprep.subr.mxu0 0.0
        %394 = vmatpush1.msra.mxu0 0.0
        %395 = vmatprep.subr.mxu0 0.0
        %396 = vmatpush1.msra.mxu0 0.0
        %397 = vmatprep.subr.mxu0 0.0
        %398 = vmatpush1.msra.mxu0 0.0
        %399 = vmatprep.subr.mxu0 0.0
        %400 = vmatpush1.msra.mxu0 0.0
        %401 = vmatprep.subr.mxu0 0.0
        %402 = vmatpush1.msra.mxu0 0.0
        %403 = vmatprep.subr.mxu0 0.0
        %404 = vmatpush1.msra.mxu0 0.0
        %405 = vmatprep.subr.mxu0 0.0
        %406 = vmatpush1.msra.mxu0 0.0
        %407 = vmatprep.subr.mxu0 0.0
        %408 = vmatpush1.msra.mxu0 0.0
        %409 = vmatprep.subr.mxu0 0.0
        %410 = vmatpush1.msra.mxu0 0.0
        %411 = vmatprep.subr.mxu0 0.0
        %412 = vmatpush1.msra.mxu0 0.0
        %413 = vmatprep.subr.mxu0 0.0
        %414 = vmatpush1.msra.mxu0 0.0
        %415 = vmatprep.subr.mxu0 0.0
        %416 = vmatpush1.msra.mxu0 0.0
        %417 = vmatprep.subr.mxu0 0.0
        %418 = vmatpush1.msra.mxu0 0.0
        %419 = vmatprep.mubr.f32.mxu0 0.0
        %420 = vmatmul.mubr.f32.gmra.mrb[0].mxu0 %v307
        %v421 = vpop.f32.mrb[0].mxu0
        %v422 = vadd.f32 0.0, %v421
        %v423 = vpop.f32.mrb[0].mxu0
        %424 = vmatprep.mubr.f32.mxu0 0.0
        %425 = vmatmul.mubr.f32.gmra.mrb[0].mxu0 %v308
        %v426 = vpop.f32.mrb[0].mxu0
        %v427 = vadd.f32 0.0, %v426
        %v428 = vpop.f32.mrb[0].mxu0
        %429 = vmatprep.mubr.f32.mxu0 0.0
        %430 = vmatmul.mubr.f32.gmra.mrb[0].mxu0 %v309
        %v431 = vpop.f32.mrb[0].mxu0
        %v432 = vadd.f32 0.0, %v431
        %v433 = vpop.f32.mrb[0].mxu0
        %434 = vmatprep.mubr.f32.mxu0 0.0
        %435 = vmatmul.mubr.f32.gmra.mrb[0].mxu0 %v310
        %v436 = vpop.f32.mrb[0].mxu0
        %v437 = vadd.f32 0.0, %v436
        %v438 = vpop.f32.mrb[0].mxu0
        %439 = vmatprep.mubr.f32.mxu0 0.0
        %440 = vmatmul.mubr.f32.gmra.mrb[0].mxu0 %v311
        %v441 = vpop.f32.mrb[0].mxu0
        %v442 = vadd.f32 0.0, %v441
        %v443 = vpop.f32.mrb[0].mxu0
        %444 = vmatprep.mubr.f32.mxu0 0.0
        %445 = vmatmul.mubr.f32.gmra.mrb[0].mxu0 %v312
        %v446 = vpop.f32.mrb[0].mxu0
        %v447 = vadd.f32 0.0, %v446
        %v448 = vpop.f32.mrb[0].mxu0
        %449 = vmatprep.mubr.f32.mxu0 0.0
        %450 = vmatmul.mubr.f32.gmra.mrb[0].mxu0 %v313
        %v451 = vpop.f32.mrb[0].mxu0
        %v452 = vadd.f32 0.0, %v451
        %v453 = vpop.f32.mrb[0].mxu0
        %454 = vmatprep.mubr.f32.mxu0 0.0
        %455 = vmatmul.mubr.f32.gmra.mrb[0].mxu0 %v314
        %v456 = vpop.f32.mrb[0].mxu0
        %v457 = vadd.f32 0.0, %v456
        %v458 = vpop.f32.mrb[0].mxu0
        %459 = vmatprep.mubr.f32.mxu0 0.0
        %460 = vmatmul.mubr.f32.gmra.mrb[0].mxu0 %v315
        %v461 = vpop.f32.mrb[0].mxu0
        %v462 = vadd.f32 0.0, %v461
        %v463 = vpop.f32.mrb[0].mxu0
        %464 = vmatprep.mubr.f32.mxu0 0.0
        %465 = vmatmul.mubr.f32.gmra.mrb[0].mxu0 %v316
        %v466 = vpop.f32.mrb[0].mxu0
        %v467 = vadd.f32 0.0, %v466
        %v468 = vpop.f32.mrb[0].mxu0
        %469 = vmatprep.mubr.f32.mxu0 0.0
        %470 = vmatmul.mubr.f32.gmra.mrb[0].mxu0 %v317
        %v471 = vpop.f32.mrb[0].mxu0
        %v472 = vadd.f32 0.0, %v471
        %v473 = vpop.f32.mrb[0].mxu0
        %474 = vmatprep.mubr.f32.mxu0 0.0
        %475 = vmatmul.mubr.f32.gmra.mrb[0].mxu0 %v318
        %v476 = vpop.f32.mrb[0].mxu0
        %v477 = vadd.f32 0.0, %v476
        %v478 = vpop.f32.mrb[0].mxu0
        %479 = vmatprep.mubr.f32.mxu0 0.0
        %480 = vmatmul.mubr.f32.gmra.mrb[0].mxu0 %v319
        %v481 = vpop.f32.mrb[0].mxu0
        %v482 = vadd.f32 0.0, %v481
        %v483 = vpop.f32.mrb[0].mxu0
        %484 = vmatprep.mubr.f32.mxu0 0.0
        %485 = vmatmul.mubr.f32.gmra.mrb[0].mxu0 %v320
        %v486 = vpop.f32.mrb[0].mxu0
        %v487 = vadd.f32 0.0, %v486
        %v488 = vpop.f32.mrb[0].mxu0
        %489 = vmatprep.mubr.f32.mxu0 0.0
        %490 = vmatmul.mubr.f32.gmra.mrb[0].mxu0 %v321
        %v491 = vpop.f32.mrb[0].mxu0
        %v492 = vadd.f32 0.0, %v491
        %v493 = vpop.f32.mrb[0].mxu0
        %494 = vmatprep.mubr.f32.mxu0 0.0
        %495 = vmatmul.mubr.f32.gmra.mrb[0].mxu0 %v322
        %v496 = vpop.f32.mrb[0].mxu0
        %v497 = vadd.f32 0.0, %v496
        %v498 = vpop.f32.mrb[0].mxu0
        %499 = vmatprep.mubr.f32.mxu0 0.0
        %500 = vmatmul.mubr.f32.gmra.mrb[0].mxu0 %v323
        %v501 = vpop.f32.mrb[0].mxu0
        %v502 = vadd.f32 0.0, %v501
        %v503 = vpop.f32.mrb[0].mxu0
        %504 = vmatprep.mubr.f32.mxu0 0.0
        %505 = vmatmul.mubr.f32.gmra.mrb[0].mxu0 %v324
        %v506 = vpop.f32.mrb[0].mxu0
        %v507 = vadd.f32 0.0, %v506
        %v508 = vpop.f32.mrb[0].mxu0
        %509 = vmatprep.mubr.f32.mxu0 0.0
        %510 = vmatmul.mubr.f32.gmra.mrb[0].mxu0 %v325
        %v511 = vpop.f32.mrb[0].mxu0
        %v512 = vadd.f32 0.0, %v511
        %v513 = vpop.f32.mrb[0].mxu0
        %514 = vmatprep.mubr.f32.mxu0 0.0
        %515 = vmatmul.mubr.f32.gmra.mrb[0].mxu0 %v326
        %v516 = vpop.f32.mrb[0].mxu0
        %v517 = vadd.f32 0.0, %v516
        %v518 = vpop.f32.mrb[0].mxu0
        %519 = vmatprep.mubr.f32.mxu0 0.0
        %520 = vmatmul.mubr.f32.gmra.mrb[0].mxu0 %v327
        %v521 = vpop.f32.mrb[0].mxu0
        %v522 = vadd.f32 0.0, %v521
        %v523 = vpop.f32.mrb[0].mxu0
        %524 = vmatprep.mubr.f32.mxu0 0.0
        %525 = vmatmul.mubr.f32.gmra.mrb[0].mxu0 %v328
        %v526 = vpop.f32.mrb[0].mxu0
        %v527 = vadd.f32 0.0, %v526
        %v528 = vpop.f32.mrb[0].mxu0
        %529 = vmatprep.mubr.f32.mxu0 0.0
        %530 = vmatmul.mubr.f32.gmra.mrb[0].mxu0 %v329
        %v531 = vpop.f32.mrb[0].mxu0
        %v532 = vadd.f32 0.0, %v531
        %v533 = vpop.f32.mrb[0].mxu0
        %534 = vmatprep.mubr.f32.mxu0 0.0
        %535 = vmatmul.mubr.f32.gmra.mrb[0].mxu0 %v330
        %v536 = vpop.f32.mrb[0].mxu0
        %v537 = vadd.f32 0.0, %v536
        %v538 = vpop.f32.mrb[0].mxu0
        %539 = vmatprep.mubr.f32.mxu0 0.0
        %540 = vmatmul.mubr.f32.gmra.mrb[0].mxu0 %v331
        %v541 = vpop.f32.mrb[0].mxu0
        %v542 = vadd.f32 0.0, %v541
        %v543 = vpop.f32.mrb[0].mxu0
        %544 = vmatprep.mubr.f32.mxu0 0.0
        %545 = vmatmul.mubr.f32.gmra.mrb[0].mxu0 %v332
        %v546 = vpop.f32.mrb[0].mxu0
        %v547 = vadd.f32 0.0, %v546
        %v548 = vpop.f32.mrb[0].mxu0
        %549 = vmatprep.mubr.f32.mxu0 0.0
        %550 = vmatmul.mubr.f32.gmra.mrb[0].mxu0 %v333
        %v551 = vpop.f32.mrb[0].mxu0
        %v552 = vadd.f32 0.0, %v551
        %v553 = vpop.f32.mrb[0].mxu0
        %554 = vmatprep.mubr.f32.mxu0 0.0
        %555 = vmatmul.mubr.f32.gmra.mrb[0].mxu0 %v334
        %v556 = vpop.f32.mrb[0].mxu0
        %v557 = vadd.f32 0.0, %v556
        %v558 = vpop.f32.mrb[0].mxu0
        %559 = vmatprep.mubr.f32.mxu0 0.0
        %560 = vmatmul.mubr.f32.gmra.mrb[0].mxu0 %v335
        %v561 = vpop.f32.mrb[0].mxu0
        %v562 = vadd.f32 0.0, %v561
        %v563 = vpop.f32.mrb[0].mxu0
        %564 = vmatprep.mubr.f32.mxu0 0.0
        %565 = vmatmul.mubr.f32.gmra.mrb[0].mxu0 %v336
        %v566 = vpop.f32.mrb[0].mxu0
        %v567 = vadd.f32 0.0, %v566
        %v568 = vpop.f32.mrb[0].mxu0
        %569 = vmatprep.mubr.f32.mxu0 0.0
        %570 = vmatmul.mubr.f32.gmra.mrb[0].mxu0 %v337
        %v571 = vpop.f32.mrb[0].mxu0
        %v572 = vadd.f32 0.0, %v571
        %v573 = vpop.f32.mrb[0].mxu0
        %574 = vmatprep.mubr.f32.mxu0 0.0
        %575 = vmatmul.mubr.f32.gmra.mrb[0].mxu0 %v338
        %v576 = vpop.f32.mrb[0].mxu0
        %v577 = vadd.f32 0.0, %v576
        %v578 = vpop.f32.mrb[0].mxu0
        %579 = vdwg.mxu0
        %v580 = vld [vmem:[%s1] sm:$0x3]
        %v581 = vld [vmem:[%s3] sm:$0xff]
        %v582 = vld [vmem:[%s3 + $0x8] sm:$0xff]
        %v583 = vld [vmem:[%s3 + $0x10] sm:$0xff]
        %v584 = vld [vmem:[%s3 + $0x18] sm:$0xff]
        %v585 = vld [vmem:[%s3 + $0x20] sm:$0xff]
        %v586 = vld [vmem:[%s3 + $0x28] sm:$0xff]
        %v587 = vld [vmem:[%s3 + $0x30] sm:$0xff]
        %v588 = vld [vmem:[%s3 + $0x38] sm:$0xff]
        %v589 = vld [vmem:[%s3 + $0x40] sm:$0xff]
        %v590 = vld [vmem:[%s3 + $0x48] sm:$0xff]
        %v591 = vld [vmem:[%s3 + $0x50] sm:$0xff]
        %v592 = vld [vmem:[%s3 + $0x58] sm:$0xff]
        %v593 = vld [vmem:[%s3 + $0x60] sm:$0xff]
        %v594 = vld [vmem:[%s3 + $0x68] sm:$0xff]
        %v595 = vld [vmem:[%s3 + $0x70] sm:$0xff]
        %v596 = vld [vmem:[%s3 + $0x78] sm:$0xff]
        %v597 = vld [vmem:[%s4] sm:$0x1]
        %v599 = vlaneseq
        %v600 = vshrl.u32 %v599, 7
        %v601 = vsub.s32 0, %v600
        %v602 = vrot.slane %v597, %v601
        %604 = vmatprep.subr.mxu0 0.0
        %605 = vmatpush1.msra.mxu0 %v581
        %606 = vmatprep.subr.mxu0 0.0
        %607 = vmatpush1.msra.mxu0 %v582
        %608 = vmatprep.subr.mxu0 0.0
        %609 = vmatpush1.msra.mxu0 %v583
        %610 = vmatprep.subr.mxu0 0.0
        %611 = vmatpush1.msra.mxu0 %v584
        %612 = vmatprep.subr.mxu0 0.0
        %613 = vmatpush1.msra.mxu0 %v585
        %614 = vmatprep.subr.mxu0 0.0
        %615 = vmatpush1.msra.mxu0 %v586
        %616 = vmatprep.subr.mxu0 0.0
        %617 = vmatpush1.msra.mxu0 %v587
        %618 = vmatprep.subr.mxu0 0.0
        %619 = vmatpush1.msra.mxu0 %v588
        %620 = vmatprep.subr.mxu0 0.0
        %621 = vmatpush1.msra.mxu0 %v589
        %622 = vmatprep.subr.mxu0 0.0
        %623 = vmatpush1.msra.mxu0 %v590
        %624 = vmatprep.subr.mxu0 0.0
        %625 = vmatpush1.msra.mxu0 %v591
        %626 = vmatprep.subr.mxu0 0.0
        %627 = vmatpush1.msra.mxu0 %v592
        %628 = vmatprep.subr.mxu0 0.0
        %629 = vmatpush1.msra.mxu0 %v593
        %630 = vmatprep.subr.mxu0 0.0
        %631 = vmatpush1.msra.mxu0 %v594
        %632 = vmatprep.subr.mxu0 0.0
        %633 = vmatpush1.msra.mxu0 %v595
        %634 = vmatprep.subr.mxu0 0.0
        %635 = vmatpush1.msra.mxu0 %v596
        %636 = vmatprep.subr.mxu0 0.0
        %637 = vmatpush1.msra.mxu0 0.0
        %638 = vmatprep.subr.mxu0 0.0
        %639 = vmatpush1.msra.mxu0 0.0
        %640 = vmatprep.subr.mxu0 0.0
        %641 = vmatpush1.msra.mxu0 0.0
        %642 = vmatprep.subr.mxu0 0.0
        %643 = vmatpush1.msra.mxu0 0.0
        %644 = vmatprep.subr.mxu0 0.0
        %645 = vmatpush1.msra.mxu0 0.0
        %646 = vmatprep.subr.mxu0 0.0
        %647 = vmatpush1.msra.mxu0 0.0
        %648 = vmatprep.subr.mxu0 0.0
        %649 = vmatpush1.msra.mxu0 0.0
        %650 = vmatprep.subr.mxu0 0.0
        %651 = vmatpush1.msra.mxu0 0.0
        %652 = vmatprep.subr.mxu0 0.0
        %653 = vmatpush1.msra.mxu0 0.0
        %654 = vmatprep.subr.mxu0 0.0
        %655 = vmatpush1.msra.mxu0 0.0
        %656 = vmatprep.subr.mxu0 0.0
        %657 = vmatpush1.msra.mxu0 0.0
        %658 = vmatprep.subr.mxu0 0.0
        %659 = vmatpush1.msra.mxu0 0.0
        %660 = vmatprep.subr.mxu0 0.0
        %661 = vmatpush1.msra.mxu0 0.0
        %662 = vmatprep.subr.mxu0 0.0
        %663 = vmatpush1.msra.mxu0 0.0
        %664 = vmatprep.subr.mxu0 0.0
        %665 = vmatpush1.msra.mxu0 0.0
        %666 = vmatprep.subr.mxu0 0.0
        %667 = vmatpush1.msra.mxu0 0.0
        %668 = vmatprep.mubr.f32.mxu0 0.0
        %669 = vmatmul.mubr.f32.gmra.mrb[0].mxu0 %v580
        %v670 = vpop.f32.mrb[0].mxu0
        %v671 = vadd.f32 %v602, %v670
        %v672 = vpop.f32.mrb[0].mxu0
        %673 = vdwg.mxu0
        %675 = vset.pattern.permute.xlu0 0
        %676 = vperm.xlu0 %675, %v671
        %v677 = vpop.permute.xlu0 %676
        %v678 = vlaneseq
        %v679 = vshrl.u32 %v678, 7
        %v680 = vsub.s32 0, %v679
        %v681 = vrot.slane %v677, %v680
        %v682 = vlaneseq
        %v683 = vshrl.u32 %v682, 7
        %v684 = vsub.s32 1, %v683
        %v685 = vrot.slane %v677, %v684
        %v688 = vadd.f32 %v422, %v681
        %v689 = vadd.f32 %v427, %v681
        %v690 = vadd.f32 %v432, %v681
        %v691 = vadd.f32 %v437, %v681
        %v692 = vadd.f32 %v442, %v681
        %v693 = vadd.f32 %v447, %v681
        %v694 = vadd.f32 %v452, %v681
        %v695 = vadd.f32 %v457, %v681
        %v696 = vadd.f32 %v462, %v681
        %v697 = vadd.f32 %v467, %v681
        %v698 = vadd.f32 %v472, %v681
        %v699 = vadd.f32 %v477, %v681
        %v700 = vadd.f32 %v482, %v681
        %v701 = vadd.f32 %v487, %v681
        %v702 = vadd.f32 %v492, %v681
        %v703 = vadd.f32 %v497, %v681
        %v704 = vadd.f32 %v502, %v685
        %v705 = vadd.f32 %v507, %v685
        %v706 = vadd.f32 %v512, %v685
        %v707 = vadd.f32 %v517, %v685
        %v708 = vadd.f32 %v522, %v685
        %v709 = vadd.f32 %v527, %v685
        %v710 = vadd.f32 %v532, %v685
        %v711 = vadd.f32 %v537, %v685
        %v712 = vadd.f32 %v542, %v685
        %v713 = vadd.f32 %v547, %v685
        %v714 = vadd.f32 %v552, %v685
        %v715 = vadd.f32 %v557, %v685
        %v716 = vadd.f32 %v562, %v685
        %v717 = vadd.f32 %v567, %v685
        %v718 = vadd.f32 %v572, %v685
        %v719 = vadd.f32 %v577, %v685
        %720 = vset.pattern.permute.xlu0 1
        %721 = vperm.xlu0 %720, %v671
        %v722 = vpop.permute.xlu0 %721
        %v723 = vlaneseq
        %v724 = vshrl.u32 %v723, 7
        %v725 = vsub.s32 0, %v724
        %v726 = vrot.slane %v722, %v725
        %v727 = vlaneseq
        %v728 = vshrl.u32 %v727, 7
        %v729 = vsub.s32 1, %v728
        %v730 = vrot.slane %v722, %v729
        %v733 = vadd.f32 %v422, %v726
        %v734 = vadd.f32 %v427, %v726
        %v735 = vadd.f32 %v432, %v726
        %v736 = vadd.f32 %v437, %v726
        %v737 = vadd.f32 %v442, %v726
        %v738 = vadd.f32 %v447, %v726
        %v739 = vadd.f32 %v452, %v726
        %v740 = vadd.f32 %v457, %v726
        %v741 = vadd.f32 %v462, %v726
        %v742 = vadd.f32 %v467, %v726
        %v743 = vadd.f32 %v472, %v726
        %v744 = vadd.f32 %v477, %v726
        %v745 = vadd.f32 %v482, %v726
        %v746 = vadd.f32 %v487, %v726
        %v747 = vadd.f32 %v492, %v726
        %v748 = vadd.f32 %v497, %v726
        %v749 = vadd.f32 %v502, %v730
        %v750 = vadd.f32 %v507, %v730
        %v751 = vadd.f32 %v512, %v730
        %v752 = vadd.f32 %v517, %v730
        %v753 = vadd.f32 %v522, %v730
        %v754 = vadd.f32 %v527, %v730
        %v755 = vadd.f32 %v532, %v730
        %v756 = vadd.f32 %v537, %v730
        %v757 = vadd.f32 %v542, %v730
        %v758 = vadd.f32 %v547, %v730
        %v759 = vadd.f32 %v552, %v730
        %v760 = vadd.f32 %v557, %v730
        %v761 = vadd.f32 %v562, %v730
        %v762 = vadd.f32 %v567, %v730
        %v763 = vadd.f32 %v572, %v730
        %v764 = vadd.f32 %v577, %v730
        %797 = vset.pattern.permute.xlu0 0
        %798 = vperm.xlu0 %797, %v688
        %v799 = vpop.permute.xlu0 %798
        %800 = vset.pattern.permute.xlu0 0
        %801 = vperm.xlu0 %800, %v689
        %v802 = vpop.permute.xlu0 %801
        %803 = vset.pattern.permute.xlu0 0
        %804 = vperm.xlu0 %803, %v690
        %v805 = vpop.permute.xlu0 %804
        %806 = vset.pattern.permute.xlu0 0
        %807 = vperm.xlu0 %806, %v691
        %v808 = vpop.permute.xlu0 %807
        %809 = vset.pattern.permute.xlu0 0
        %810 = vperm.xlu0 %809, %v692
        %v811 = vpop.permute.xlu0 %810
        %812 = vset.pattern.permute.xlu0 0
        %813 = vperm.xlu0 %812, %v693
        %v814 = vpop.permute.xlu0 %813
        %815 = vset.pattern.permute.xlu0 0
        %816 = vperm.xlu0 %815, %v694
        %v817 = vpop.permute.xlu0 %816
        %818 = vset.pattern.permute.xlu0 0
        %819 = vperm.xlu0 %818, %v695
        %v820 = vpop.permute.xlu0 %819
        %821 = vset.pattern.permute.xlu0 0
        %822 = vperm.xlu0 %821, %v696
        %v823 = vpop.permute.xlu0 %822
        %824 = vset.pattern.permute.xlu0 0
        %825 = vperm.xlu0 %824, %v697
        %v826 = vpop.permute.xlu0 %825
        %827 = vset.pattern.permute.xlu0 0
        %828 = vperm.xlu0 %827, %v698
        %v829 = vpop.permute.xlu0 %828
        %830 = vset.pattern.permute.xlu0 0
        %831 = vperm.xlu0 %830, %v699
        %v832 = vpop.permute.xlu0 %831
        %833 = vset.pattern.permute.xlu0 0
        %834 = vperm.xlu0 %833, %v700
        %v835 = vpop.permute.xlu0 %834
        %836 = vset.pattern.permute.xlu0 0
        %837 = vperm.xlu0 %836, %v701
        %v838 = vpop.permute.xlu0 %837
        %839 = vset.pattern.permute.xlu0 0
        %840 = vperm.xlu0 %839, %v702
        %v841 = vpop.permute.xlu0 %840
        %842 = vset.pattern.permute.xlu0 0
        %843 = vperm.xlu0 %842, %v703
        %v844 = vpop.permute.xlu0 %843
        %845 = vset.pattern.permute.xlu0 0
        %846 = vperm.xlu0 %845, %v704
        %v847 = vpop.permute.xlu0 %846
        %848 = vset.pattern.permute.xlu0 0
        %849 = vperm.xlu0 %848, %v705
        %v850 = vpop.permute.xlu0 %849
        %851 = vset.pattern.permute.xlu0 0
        %852 = vperm.xlu0 %851, %v706
        %v853 = vpop.permute.xlu0 %852
        %854 = vset.pattern.permute.xlu0 0
        %855 = vperm.xlu0 %854, %v707
        %v856 = vpop.permute.xlu0 %855
        %857 = vset.pattern.permute.xlu0 0
        %858 = vperm.xlu0 %857, %v708
        %v859 = vpop.permute.xlu0 %858
        %860 = vset.pattern.permute.xlu0 0
        %861 = vperm.xlu0 %860, %v709
        %v862 = vpop.permute.xlu0 %861
        %863 = vset.pattern.permute.xlu0 0
        %864 = vperm.xlu0 %863, %v710
        %v865 = vpop.permute.xlu0 %864
        %866 = vset.pattern.permute.xlu0 0
        %867 = vperm.xlu0 %866, %v711
        %v868 = vpop.permute.xlu0 %867
        %869 = vset.pattern.permute.xlu0 0
        %870 = vperm.xlu0 %869, %v712
        %v871 = vpop.permute.xlu0 %870
        %872 = vset.pattern.permute.xlu0 0
        %873 = vperm.xlu0 %872, %v713
        %v874 = vpop.permute.xlu0 %873
        %875 = vset.pattern.permute.xlu0 0
        %876 = vperm.xlu0 %875, %v714
        %v877 = vpop.permute.xlu0 %876
        %878 = vset.pattern.permute.xlu0 0
        %879 = vperm.xlu0 %878, %v715
        %v880 = vpop.permute.xlu0 %879
        %881 = vset.pattern.permute.xlu0 0
        %882 = vperm.xlu0 %881, %v716
        %v883 = vpop.permute.xlu0 %882
        %884 = vset.pattern.permute.xlu0 0
        %885 = vperm.xlu0 %884, %v717
        %v886 = vpop.permute.xlu0 %885
        %887 = vset.pattern.permute.xlu0 0
        %888 = vperm.xlu0 %887, %v718
        %v889 = vpop.permute.xlu0 %888
        %890 = vset.pattern.permute.xlu0 0
        %891 = vperm.xlu0 %890, %v719
        %v892 = vpop.permute.xlu0 %891
        %v893 = vlaneseq
        %v894 = vand.u32 %v893, 127
        %v895 = vlaneseq
        %v896 = vshrl.u32 %v895, 7
        %v897 = vsub.s32 %v894, %v896
        %v898 = vrot.slane %v799, %v897
        %v899 = vadd.s32 %v894, 4294967288
        %v900 = vlaneseq
        %v901 = vshrl.u32 %v900, 7
        %v902 = vsub.s32 %v899, %v901
        %v903 = vrot.slane %v802, %v902
        %vm904 = vcmask 130112
        %v905 = vsel %vm904, %v903, %v898
        %v906 = vadd.s32 %v894, 4294967280
        %v907 = vlaneseq
        %v908 = vshrl.u32 %v907, 7
        %v909 = vsub.s32 %v906, %v908
        %v910 = vrot.slane %v805, %v909
        %vm911 = vcmask 195712
        %v912 = vsel %vm911, %v910, %v905
        %v913 = vadd.s32 %v894, 4294967272
        %v914 = vlaneseq
        %v915 = vshrl.u32 %v914, 7
        %v916 = vsub.s32 %v913, %v915
        %v917 = vrot.slane %v808, %v916
        %vm918 = vcmask 261312
        %v919 = vsel %vm918, %v917, %v912
        %v920 = vadd.s32 %v894, 4294967264
        %v921 = vlaneseq
        %v922 = vshrl.u32 %v921, 7
        %v923 = vsub.s32 %v920, %v922
        %v924 = vrot.slane %v811, %v923
        %vm925 = vcmask 326912
        %v926 = vsel %vm925, %v924, %v919
        %v927 = vadd.s32 %v894, 4294967256
        %v928 = vlaneseq
        %v929 = vshrl.u32 %v928, 7
        %v930 = vsub.s32 %v927, %v929
        %v931 = vrot.slane %v814, %v930
        %vm932 = vcmask 392512
        %v933 = vsel %vm932, %v931, %v926
        %v934 = vadd.s32 %v894, 4294967248
        %v935 = vlaneseq
        %v936 = vshrl.u32 %v935, 7
        %v937 = vsub.s32 %v934, %v936
        %v938 = vrot.slane %v817, %v937
        %vm939 = vcmask 458112
        %v940 = vsel %vm939, %v938, %v933
        %v941 = vadd.s32 %v894, 4294967240
        %v942 = vlaneseq
        %v943 = vshrl.u32 %v942, 7
        %v944 = vsub.s32 %v941, %v943
        %v945 = vrot.slane %v820, %v944
        %vm946 = vcmask 523712
        %v947 = vsel %vm946, %v945, %v940
        %v948 = vadd.s32 %v894, 4294967232
        %v949 = vlaneseq
        %v950 = vshrl.u32 %v949, 7
        %v951 = vsub.s32 %v948, %v950
        %v952 = vrot.slane %v823, %v951
        %vm953 = vcmask 589312
        %v954 = vsel %vm953, %v952, %v947
        %v955 = vadd.s32 %v894, 4294967224
        %v956 = vlaneseq
        %v957 = vshrl.u32 %v956, 7
        %v958 = vsub.s32 %v955, %v957
        %v959 = vrot.slane %v826, %v958
        %vm960 = vcmask 654912
        %v961 = vsel %vm960, %v959, %v954
        %v962 = vadd.s32 %v894, 4294967216
        %v963 = vlaneseq
        %v964 = vshrl.u32 %v963, 7
        %v965 = vsub.s32 %v962, %v964
        %v966 = vrot.slane %v829, %v965
        %vm967 = vcmask 720512
        %v968 = vsel %vm967, %v966, %v961
        %v969 = vadd.s32 %v894, 4294967208
        %v970 = vlaneseq
        %v971 = vshrl.u32 %v970, 7
        %v972 = vsub.s32 %v969, %v971
        %v973 = vrot.slane %v832, %v972
        %vm974 = vcmask 786112
        %v975 = vsel %vm974, %v973, %v968
        %v976 = vadd.s32 %v894, 4294967200
        %v977 = vlaneseq
        %v978 = vshrl.u32 %v977, 7
        %v979 = vsub.s32 %v976, %v978
        %v980 = vrot.slane %v835, %v979
        %vm981 = vcmask 851712
        %v982 = vsel %vm981, %v980, %v975
        %v983 = vadd.s32 %v894, 4294967192
        %v984 = vlaneseq
        %v985 = vshrl.u32 %v984, 7
        %v986 = vsub.s32 %v983, %v985
        %v987 = vrot.slane %v838, %v986
        %vm988 = vcmask 917312
        %v989 = vsel %vm988, %v987, %v982
        %v990 = vadd.s32 %v894, 4294967184
        %v991 = vlaneseq
        %v992 = vshrl.u32 %v991, 7
        %v993 = vsub.s32 %v990, %v992
        %v994 = vrot.slane %v841, %v993
        %vm995 = vcmask 982912
        %v996 = vsel %vm995, %v994, %v989
        %v997 = vadd.s32 %v894, 4294967176
        %v998 = vlaneseq
        %v999 = vshrl.u32 %v998, 7
        %v1000 = vsub.s32 %v997, %v999
        %v1001 = vrot.slane %v844, %v1000
        %vm1002 = vcmask 1048512
        %v1003 = vsel %vm1002, %v1001, %v996
        %v1004 = vlaneseq
        %v1005 = vshrl.u32 %v1004, 7
        %v1006 = vsub.s32 %v894, %v1005
        %v1007 = vrot.slane %v847, %v1006
        %v1008 = vlaneseq
        %v1009 = vshrl.u32 %v1008, 7
        %v1010 = vsub.s32 %v899, %v1009
        %v1011 = vrot.slane %v850, %v1010
        %v1012 = vsel %vm904, %v1011, %v1007
        %v1013 = vlaneseq
        %v1014 = vshrl.u32 %v1013, 7
        %v1015 = vsub.s32 %v906, %v1014
        %v1016 = vrot.slane %v853, %v1015
        %v1017 = vsel %vm911, %v1016, %v1012
        %v1018 = vlaneseq
        %v1019 = vshrl.u32 %v1018, 7
        %v1020 = vsub.s32 %v913, %v1019
        %v1021 = vrot.slane %v856, %v1020
        %v1022 = vsel %vm918, %v1021, %v1017
        %v1023 = vlaneseq
        %v1024 = vshrl.u32 %v1023, 7
        %v1025 = vsub.s32 %v920, %v1024
        %v1026 = vrot.slane %v859, %v1025
        %v1027 = vsel %vm925, %v1026, %v1022
        %v1028 = vlaneseq
        %v1029 = vshrl.u32 %v1028, 7
        %v1030 = vsub.s32 %v927, %v1029
        %v1031 = vrot.slane %v862, %v1030
        %v1032 = vsel %vm932, %v1031, %v1027
        %v1033 = vlaneseq
        %v1034 = vshrl.u32 %v1033, 7
        %v1035 = vsub.s32 %v934, %v1034
        %v1036 = vrot.slane %v865, %v1035
        %v1037 = vsel %vm939, %v1036, %v1032
        %v1038 = vlaneseq
        %v1039 = vshrl.u32 %v1038, 7
        %v1040 = vsub.s32 %v941, %v1039
        %v1041 = vrot.slane %v868, %v1040
        %v1042 = vsel %vm946, %v1041, %v1037
        %v1043 = vlaneseq
        %v1044 = vshrl.u32 %v1043, 7
        %v1045 = vsub.s32 %v948, %v1044
        %v1046 = vrot.slane %v871, %v1045
        %v1047 = vsel %vm953, %v1046, %v1042
        %v1048 = vlaneseq
        %v1049 = vshrl.u32 %v1048, 7
        %v1050 = vsub.s32 %v955, %v1049
        %v1051 = vrot.slane %v874, %v1050
        %v1052 = vsel %vm960, %v1051, %v1047
        %v1053 = vlaneseq
        %v1054 = vshrl.u32 %v1053, 7
        %v1055 = vsub.s32 %v962, %v1054
        %v1056 = vrot.slane %v877, %v1055
        %v1057 = vsel %vm967, %v1056, %v1052
        %v1058 = vlaneseq
        %v1059 = vshrl.u32 %v1058, 7
        %v1060 = vsub.s32 %v969, %v1059
        %v1061 = vrot.slane %v880, %v1060
        %v1062 = vsel %vm974, %v1061, %v1057
        %v1063 = vlaneseq
        %v1064 = vshrl.u32 %v1063, 7
        %v1065 = vsub.s32 %v976, %v1064
        %v1066 = vrot.slane %v883, %v1065
        %v1067 = vsel %vm981, %v1066, %v1062
        %v1068 = vlaneseq
        %v1069 = vshrl.u32 %v1068, 7
        %v1070 = vsub.s32 %v983, %v1069
        %v1071 = vrot.slane %v886, %v1070
        %v1072 = vsel %vm988, %v1071, %v1067
        %v1073 = vlaneseq
        %v1074 = vshrl.u32 %v1073, 7
        %v1075 = vsub.s32 %v990, %v1074
        %v1076 = vrot.slane %v889, %v1075
        %v1077 = vsel %vm995, %v1076, %v1072
        %v1078 = vlaneseq
        %v1079 = vshrl.u32 %v1078, 7
        %v1080 = vsub.s32 %v997, %v1079
        %v1081 = vrot.slane %v892, %v1080
        %v1082 = vsel %vm1002, %v1081, %v1077
        %vm1083 = vcmask 1041409
        %v1084 = vsel %vm1083, %v1082, %v1003
        %1086 = vst [vmem:[%s298] sm:$0x3] %v1084
        %1119 = vset.pattern.permute.xlu0 1
        %1120 = vperm.xlu0 %1119, %v733
        %v1121 = vpop.permute.xlu0 %1120
        %1122 = vset.pattern.permute.xlu0 1
        %1123 = vperm.xlu0 %1122, %v734
        %v1124 = vpop.permute.xlu0 %1123
        %1125 = vset.pattern.permute.xlu0 1
        %1126 = vperm.xlu0 %1125, %v735
        %v1127 = vpop.permute.xlu0 %1126
        %1128 = vset.pattern.permute.xlu0 1
        %1129 = vperm.xlu0 %1128, %v736
        %v1130 = vpop.permute.xlu0 %1129
        %1131 = vset.pattern.permute.xlu0 1
        %1132 = vperm.xlu0 %1131, %v737
        %v1133 = vpop.permute.xlu0 %1132
        %1134 = vset.pattern.permute.xlu0 1
        %1135 = vperm.xlu0 %1134, %v738
        %v1136 = vpop.permute.xlu0 %1135
        %1137 = vset.pattern.permute.xlu0 1
        %1138 = vperm.xlu0 %1137, %v739
        %v1139 = vpop.permute.xlu0 %1138
        %1140 = vset.pattern.permute.xlu0 1
        %1141 = vperm.xlu0 %1140, %v740
        %v1142 = vpop.permute.xlu0 %1141
        %1143 = vset.pattern.permute.xlu0 1
        %1144 = vperm.xlu0 %1143, %v741
        %v1145 = vpop.permute.xlu0 %1144
        %1146 = vset.pattern.permute.xlu0 1
        %1147 = vperm.xlu0 %1146, %v742
        %v1148 = vpop.permute.xlu0 %1147
        %1149 = vset.pattern.permute.xlu0 1
        %1150 = vperm.xlu0 %1149, %v743
        %v1151 = vpop.permute.xlu0 %1150
        %1152 = vset.pattern.permute.xlu0 1
        %1153 = vperm.xlu0 %1152, %v744
        %v1154 = vpop.permute.xlu0 %1153
        %1155 = vset.pattern.permute.xlu0 1
        %1156 = vperm.xlu0 %1155, %v745
        %v1157 = vpop.permute.xlu0 %1156
        %1158 = vset.pattern.permute.xlu0 1
        %1159 = vperm.xlu0 %1158, %v746
        %v1160 = vpop.permute.xlu0 %1159
        %1161 = vset.pattern.permute.xlu0 1
        %1162 = vperm.xlu0 %1161, %v747
        %v1163 = vpop.permute.xlu0 %1162
        %1164 = vset.pattern.permute.xlu0 1
        %1165 = vperm.xlu0 %1164, %v748
        %v1166 = vpop.permute.xlu0 %1165
        %1167 = vset.pattern.permute.xlu0 1
        %1168 = vperm.xlu0 %1167, %v749
        %v1169 = vpop.permute.xlu0 %1168
        %1170 = vset.pattern.permute.xlu0 1
        %1171 = vperm.xlu0 %1170, %v750
        %v1172 = vpop.permute.xlu0 %1171
        %1173 = vset.pattern.permute.xlu0 1
        %1174 = vperm.xlu0 %1173, %v751
        %v1175 = vpop.permute.xlu0 %1174
        %1176 = vset.pattern.permute.xlu0 1
        %1177 = vperm.xlu0 %1176, %v752
        %v1178 = vpop.permute.xlu0 %1177
        %1179 = vset.pattern.permute.xlu0 1
        %1180 = vperm.xlu0 %1179, %v753
        %v1181 = vpop.permute.xlu0 %1180
        %1182 = vset.pattern.permute.xlu0 1
        %1183 = vperm.xlu0 %1182, %v754
        %v1184 = vpop.permute.xlu0 %1183
        %1185 = vset.pattern.permute.xlu0 1
        %1186 = vperm.xlu0 %1185, %v755
        %v1187 = vpop.permute.xlu0 %1186
        %1188 = vset.pattern.permute.xlu0 1
        %1189 = vperm.xlu0 %1188, %v756
        %v1190 = vpop.permute.xlu0 %1189
        %1191 = vset.pattern.permute.xlu0 1
        %1192 = vperm.xlu0 %1191, %v757
        %v1193 = vpop.permute.xlu0 %1192
        %1194 = vset.pattern.permute.xlu0 1
        %1195 = vperm.xlu0 %1194, %v758
        %v1196 = vpop.permute.xlu0 %1195
        %1197 = vset.pattern.permute.xlu0 1
        %1198 = vperm.xlu0 %1197, %v759
        %v1199 = vpop.permute.xlu0 %1198
        %1200 = vset.pattern.permute.xlu0 1
        %1201 = vperm.xlu0 %1200, %v760
        %v1202 = vpop.permute.xlu0 %1201
        %1203 = vset.pattern.permute.xlu0 1
        %1204 = vperm.xlu0 %1203, %v761
        %v1205 = vpop.permute.xlu0 %1204
        %1206 = vset.pattern.permute.xlu0 1
        %1207 = vperm.xlu0 %1206, %v762
        %v1208 = vpop.permute.xlu0 %1207
        %1209 = vset.pattern.permute.xlu0 1
        %1210 = vperm.xlu0 %1209, %v763
        %v1211 = vpop.permute.xlu0 %1210
        %1212 = vset.pattern.permute.xlu0 1
        %1213 = vperm.xlu0 %1212, %v764
        %v1214 = vpop.permute.xlu0 %1213
        %v1215 = vlaneseq
        %v1216 = vshrl.u32 %v1215, 7
        %v1217 = vsub.s32 %v894, %v1216
        %v1218 = vrot.slane %v1121, %v1217
        %v1219 = vlaneseq
        %v1220 = vshrl.u32 %v1219, 7
        %v1221 = vsub.s32 %v899, %v1220
        %v1222 = vrot.slane %v1124, %v1221
        %v1223 = vsel %vm904, %v1222, %v1218
        %v1224 = vlaneseq
        %v1225 = vshrl.u32 %v1224, 7
        %v1226 = vsub.s32 %v906, %v1225
        %v1227 = vrot.slane %v1127, %v1226
        %v1228 = vsel %vm911, %v1227, %v1223
        %v1229 = vlaneseq
        %v1230 = vshrl.u32 %v1229, 7
        %v1231 = vsub.s32 %v913, %v1230
        %v1232 = vrot.slane %v1130, %v1231
        %v1233 = vsel %vm918, %v1232, %v1228
        %v1234 = vlaneseq
        %v1235 = vshrl.u32 %v1234, 7
        %v1236 = vsub.s32 %v920, %v1235
        %v1237 = vrot.slane %v1133, %v1236
        %v1238 = vsel %vm925, %v1237, %v1233
        %v1239 = vlaneseq
        %v1240 = vshrl.u32 %v1239, 7
        %v1241 = vsub.s32 %v927, %v1240
        %v1242 = vrot.slane %v1136, %v1241
        %v1243 = vsel %vm932, %v1242, %v1238
        %v1244 = vlaneseq
        %v1245 = vshrl.u32 %v1244, 7
        %v1246 = vsub.s32 %v934, %v1245
        %v1247 = vrot.slane %v1139, %v1246
        %v1248 = vsel %vm939, %v1247, %v1243
        %v1249 = vlaneseq
        %v1250 = vshrl.u32 %v1249, 7
        %v1251 = vsub.s32 %v941, %v1250
        %v1252 = vrot.slane %v1142, %v1251
        %v1253 = vsel %vm946, %v1252, %v1248
        %v1254 = vlaneseq
        %v1255 = vshrl.u32 %v1254, 7
        %v1256 = vsub.s32 %v948, %v1255
        %v1257 = vrot.slane %v1145, %v1256
        %v1258 = vsel %vm953, %v1257, %v1253
        %v1259 = vlaneseq
        %v1260 = vshrl.u32 %v1259, 7
        %v1261 = vsub.s32 %v955, %v1260
        %v1262 = vrot.slane %v1148, %v1261
        %v1263 = vsel %vm960, %v1262, %v1258
        %v1264 = vlaneseq
        %v1265 = vshrl.u32 %v1264, 7
        %v1266 = vsub.s32 %v962, %v1265
        %v1267 = vrot.slane %v1151, %v1266
        %v1268 = vsel %vm967, %v1267, %v1263
        %v1269 = vlaneseq
        %v1270 = vshrl.u32 %v1269, 7
        %v1271 = vsub.s32 %v969, %v1270
        %v1272 = vrot.slane %v1154, %v1271
        %v1273 = vsel %vm974, %v1272, %v1268
        %v1274 = vlaneseq
        %v1275 = vshrl.u32 %v1274, 7
        %v1276 = vsub.s32 %v976, %v1275
        %v1277 = vrot.slane %v1157, %v1276
        %v1278 = vsel %vm981, %v1277, %v1273
        %v1279 = vlaneseq
        %v1280 = vshrl.u32 %v1279, 7
        %v1281 = vsub.s32 %v983, %v1280
        %v1282 = vrot.slane %v1160, %v1281
        %v1283 = vsel %vm988, %v1282, %v1278
        %v1284 = vlaneseq
        %v1285 = vshrl.u32 %v1284, 7
        %v1286 = vsub.s32 %v990, %v1285
        %v1287 = vrot.slane %v1163, %v1286
        %v1288 = vsel %vm995, %v1287, %v1283
        %v1289 = vlaneseq
        %v1290 = vshrl.u32 %v1289, 7
        %v1291 = vsub.s32 %v997, %v1290
        %v1292 = vrot.slane %v1166, %v1291
        %v1293 = vsel %vm1002, %v1292, %v1288
        %v1294 = vlaneseq
        %v1295 = vshrl.u32 %v1294, 7
        %v1296 = vsub.s32 %v894, %v1295
        %v1297 = vrot.slane %v1169, %v1296
        %v1298 = vlaneseq
        %v1299 = vshrl.u32 %v1298, 7
        %v1300 = vsub.s32 %v899, %v1299
        %v1301 = vrot.slane %v1172, %v1300
        %v1302 = vsel %vm904, %v1301, %v1297
        %v1303 = vlaneseq
        %v1304 = vshrl.u32 %v1303, 7
        %v1305 = vsub.s32 %v906, %v1304
        %v1306 = vrot.slane %v1175, %v1305
        %v1307 = vsel %vm911, %v1306, %v1302
        %v1308 = vlaneseq
        %v1309 = vshrl.u32 %v1308, 7
        %v1310 = vsub.s32 %v913, %v1309
        %v1311 = vrot.slane %v1178, %v1310
        %v1312 = vsel %vm918, %v1311, %v1307
        %v1313 = vlaneseq
        %v1314 = vshrl.u32 %v1313, 7
        %v1315 = vsub.s32 %v920, %v1314
        %v1316 = vrot.slane %v1181, %v1315
        %v1317 = vsel %vm925, %v1316, %v1312
        %v1318 = vlaneseq
        %v1319 = vshrl.u32 %v1318, 7
        %v1320 = vsub.s32 %v927, %v1319
        %v1321 = vrot.slane %v1184, %v1320
        %v1322 = vsel %vm932, %v1321, %v1317
        %v1323 = vlaneseq
        %v1324 = vshrl.u32 %v1323, 7
        %v1325 = vsub.s32 %v934, %v1324
        %v1326 = vrot.slane %v1187, %v1325
        %v1327 = vsel %vm939, %v1326, %v1322
        %v1328 = vlaneseq
        %v1329 = vshrl.u32 %v1328, 7
        %v1330 = vsub.s32 %v941, %v1329
        %v1331 = vrot.slane %v1190, %v1330
        %v1332 = vsel %vm946, %v1331, %v1327
        %v1333 = vlaneseq
        %v1334 = vshrl.u32 %v1333, 7
        %v1335 = vsub.s32 %v948, %v1334
        %v1336 = vrot.slane %v1193, %v1335
        %v1337 = vsel %vm953, %v1336, %v1332
        %v1338 = vlaneseq
        %v1339 = vshrl.u32 %v1338, 7
        %v1340 = vsub.s32 %v955, %v1339
        %v1341 = vrot.slane %v1196, %v1340
        %v1342 = vsel %vm960, %v1341, %v1337
        %v1343 = vlaneseq
        %v1344 = vshrl.u32 %v1343, 7
        %v1345 = vsub.s32 %v962, %v1344
        %v1346 = vrot.slane %v1199, %v1345
        %v1347 = vsel %vm967, %v1346, %v1342
        %v1348 = vlaneseq
        %v1349 = vshrl.u32 %v1348, 7
        %v1350 = vsub.s32 %v969, %v1349
        %v1351 = vrot.slane %v1202, %v1350
        %v1352 = vsel %vm974, %v1351, %v1347
        %v1353 = vlaneseq
        %v1354 = vshrl.u32 %v1353, 7
        %v1355 = vsub.s32 %v976, %v1354
        %v1356 = vrot.slane %v1205, %v1355
        %v1357 = vsel %vm981, %v1356, %v1352
        %v1358 = vlaneseq
        %v1359 = vshrl.u32 %v1358, 7
        %v1360 = vsub.s32 %v983, %v1359
        %v1361 = vrot.slane %v1208, %v1360
        %v1362 = vsel %vm988, %v1361, %v1357
        %v1363 = vlaneseq
        %v1364 = vshrl.u32 %v1363, 7
        %v1365 = vsub.s32 %v990, %v1364
        %v1366 = vrot.slane %v1211, %v1365
        %v1367 = vsel %vm995, %v1366, %v1362
        %v1368 = vlaneseq
        %v1369 = vshrl.u32 %v1368, 7
        %v1370 = vsub.s32 %v997, %v1369
        %v1371 = vrot.slane %v1214, %v1370
        %v1372 = vsel %vm1002, %v1371, %v1367
        %v1373 = vsel %vm1083, %v1372, %v1293
        %1375 = vst [vmem:[%s305] sm:$0x3] %v1373
        %s1376 = sand.u32 %s145, 1
        %s1377 = scalar_lea.sflag [#allocation4], %s1376
        %s1378 = sand.u32 %s145, 1
        %s1379 = smul.addr %s1378, 2
        %s1380 = scalar_lea.vmem [#allocation5], %s1379
        %s1381 = sand.u32 %s171, 1
        %s1382 = scalar_lea.sflag [#allocation7], %s1381
        %s1383 = sand.u32 %s171, 1
        %s1384 = smul.addr %s1383, 2
        %s1385 = scalar_lea.vmem [#allocation6], %s1384
        // Predicated region
        $region45: #{tpu_custom_call.1} parent=39 // pred_check
          %p1386 = pneg %p155
        $region46: #{tpu_custom_call.1} parent=39 // pred_check_branch
          %1388 = sbr.rel (%p1386) target = $region48
        $region47: #{tpu_custom_call.1} parent=39 // pred_region
          %s1390 = ssub.s32 32, 32
          %1391 = vsyncadd %s1377, %s1390
          %s1392 = smul.addr %s27, 32
          %s1393 = scalar_lea.hbm %s5, %s1392
          %s1395 = sshll.u32 %s1380, 4
          %s1396 = int_to_ptr.vmem [resolvable:$true] %s1395
          %1398 = dma.vmem_to_hbm [thread:$0]  %s1396, 32, %s1393, %s1377
        $region48: #{tpu_custom_call.1} parent=39 // pred_fallthru
          _
        // Predicated region
        $region49: #{tpu_custom_call.1} parent=39 // pred_check
          %p1399 = pneg %p181
        $region50: #{tpu_custom_call.1} parent=39 // pred_check_branch
          %1401 = sbr.rel (%p1399) target = $region52
        $region51: #{tpu_custom_call.1} parent=39 // pred_region
          %s1403 = ssub.s32 32, 32
          %1404 = vsyncadd %s1382, %s1403
          %s1405 = smul.addr %s27, 32
          %s1406 = scalar_lea.hbm %s6, %s1405
          %s1408 = sshll.u32 %s1385, 4
          %s1409 = int_to_ptr.vmem [resolvable:$true] %s1408
          %1411 = dma.vmem_to_hbm [thread:$0]  %s1409, 32, %s1406, %s1382
        $region52: #{tpu_custom_call.1} parent=39 // pred_fallthru
          _
      $region40: #{tpu_custom_call.1} parent=5 // pred_fallthru
        _
      %p1412 = scmp.le.s32.totalorder 2, %s22
      // Predicated region
      $region53: #{tpu_custom_call.1} parent=5 // pred_check
        %p1413 = pneg %p1412
      $region54: #{tpu_custom_call.1} parent=5 // pred_check_branch
        %1415 = sbr.rel (%p1413) target = $region56
      $region55: #{tpu_custom_call.1} parent=5 // pred_region
        %s1416 = ssub.s32 %s22, 2
        // Predicated region
        $region57: #{tpu_custom_call.1} parent=55 // pred_check
          %p1417 = pneg %p161
        $region58: #{tpu_custom_call.1} parent=55 // pred_check_branch
          %1419 = sbr.rel (%p1417) target = $region60
        $region59: #{tpu_custom_call.1} parent=55 // pred_region
          %s1420 = sand.u32 %s146, 1
          %s1421 = scalar_lea.sflag [#allocation4], %s1420
          %s1422 = sand.u32 %s146, 1
          %s1423 = smul.addr %s1422, 2
          %s1424 = scalar_lea.vmem [#allocation5], %s1423
          %1425 = dma.done %s1421, 32
        $region60: #{tpu_custom_call.1} parent=55 // pred_fallthru
          _
        // Predicated region
        $region61: #{tpu_custom_call.1} parent=55 // pred_check
          %p1426 = pneg %p187
        $region62: #{tpu_custom_call.1} parent=55 // pred_check_branch
          %1428 = sbr.rel (%p1426) target = $region64
        $region63: #{tpu_custom_call.1} parent=55 // pred_region
          %s1429 = sand.u32 %s172, 1
          %s1430 = scalar_lea.sflag [#allocation7], %s1429
          %s1431 = sand.u32 %s172, 1
          %s1432 = smul.addr %s1431, 2
          %s1433 = scalar_lea.vmem [#allocation6], %s1432
          %1434 = dma.done %s1430, 32
        $region64: #{tpu_custom_call.1} parent=55 // pred_fallthru
          _
      $region56: #{tpu_custom_call.1} parent=5 // pred_fallthru
        _
    $region6: #{tpu_custom_call.1} parent=1 // loop_footer
      %s26 = sadd.s32 1, %s22
    $region7: #{tpu_custom_call.1} parent=1 // loop_footer_branch
      %21 = sbr.rel target = $region3
    $region8: #{tpu_custom_call.1} parent=1 // loop_exit
      _
    %1435 = vsyncpa [#allocation3], 1
    %s1436 = scalar_lea.sflag [#allocation3], 1
    %1437 = vsyncpa %s1436, 1
    %1438 = vsyncpa [#allocation4], 1
    %s1439 = scalar_lea.sflag [#allocation4], 1
    %1440 = vsyncpa %s1439, 1
    %1441 = vsyncpa [#allocation7], 1
    %s1442 = scalar_lea.sflag [#allocation7], 1
    %1443 = vsyncpa %s1442, 1

</llo_original>
